<compile_context>
chip_gen: v7x
topology: tpu7x:2x2x1
jax: 0.10.0
libtpu: 0.0.40
codegen_flags: <defaults>
</compile_context>

<pallas_src>
import numpy as np
import jax
import jax.numpy as jnp
from jax.experimental import pallas as pl
from jax.experimental.pallas import tpu as pltpu

# num_features = 8 numerical + 3 categorical + 21 RFV one-hot columns = 32
NUM_FEATURES = 32
HIDDEN = 200          # logical hidden width (PyTorch model)
HIDDEN_PAD = 256      # lane-aligned padded hidden width used inside the kernel
NUM_CLASSES = 2
MAX_BATCH_TILE = 1024 # rows per grid step (multiple of 8)


def _round_up(n, m):
    return ((n + m - 1) // m) * m


def mlp_kernel(x_ref, w1_ref, b1_ref, w2_ref, b2_ref, o_ref):
    # One batch tile: two MXU matmuls with a VPU bias+ReLU in between, f32 accumulate.
    x = x_ref[...]                                        # [TB, F]   bf16
    h = jnp.dot(x, w1_ref[...],
                preferred_element_type=jnp.float32)       # [TB, Hp]  f32
    h = jnp.maximum(h + b1_ref[...], 0.0)                 # bias + ReLU
    h = h.astype(w2_ref.dtype)                            # bf16 back onto the MXU
    out = jnp.dot(h, w2_ref[...],
                  preferred_element_type=jnp.float32)     # [TB, C]   f32
    o_ref[...] = (out + b2_ref[...]).astype(o_ref.dtype)


def prepare_params(w1_t, b1, w2_t, b2):
    """Zero-pad hidden 200->256 and cast weights to bf16 (done once, outside the kernel)."""
    pad = HIDDEN_PAD - HIDDEN
    w1_p = jnp.pad(w1_t, ((0, 0), (0, pad))).astype(jnp.bfloat16)   # [F, Hp]
    b1_p = jnp.pad(b1, ((0, 0), (0, pad))).astype(jnp.float32)      # [1, Hp]
    w2_p = jnp.pad(w2_t, ((0, pad), (0, 0))).astype(jnp.bfloat16)   # [Hp, C]
    b2_p = b2.astype(jnp.float32)                                   # [1, C]
    return w1_p, b1_p, w2_p, b2_p


def mynet_forward(x, w1_p, b1_p, w2_p, b2_p, *, batch_tile=MAX_BATCH_TILE):
    B = x.shape[0]
    # Batch tile: multiple of 8 sublanes, capped at MAX_BATCH_TILE, never bigger than
    # (padded) B. Feature (32) / class (2) dims equal the full array dims, so they are
    # exempt from the (8,128) divisibility rule.
    tb = min(batch_tile, _round_up(B, 8))
    b_pad = _round_up(B, tb)

    x = x.astype(jnp.bfloat16)
    if b_pad != B:
        x = jnp.pad(x, ((0, b_pad - B), (0, 0)))  # guard the ragged tail tile

    grid = (pl.cdiv(b_pad, tb),)
    out = pl.pallas_call(
        mlp_kernel,
        out_shape=jax.ShapeDtypeStruct((b_pad, NUM_CLASSES), jnp.float32),
        grid=grid,
        in_specs=[
            pl.BlockSpec((tb, NUM_FEATURES), lambda i: (i, 0)),          # x (streamed)
            pl.BlockSpec((NUM_FEATURES, HIDDEN_PAD), lambda i: (0, 0)),  # W1^T (resident)
            pl.BlockSpec((1, HIDDEN_PAD), lambda i: (0, 0)),             # b1   (resident)
            pl.BlockSpec((HIDDEN_PAD, NUM_CLASSES), lambda i: (0, 0)),   # W2^T (resident)
            pl.BlockSpec((1, NUM_CLASSES), lambda i: (0, 0)),            # b2   (resident)
        ],
        out_specs=pl.BlockSpec((tb, NUM_CLASSES), lambda i: (i, 0)),
        compiler_params=pltpu.CompilerParams(
            dimension_semantics=("parallel",),  # lets v7x shard batch tiles across 2 TCs
        ),
    )(x, w1_p, b1_p, w2_p, b2_p)

    if b_pad != B:
        out = out[:B]
    return out


def init_params(key):
    # PyTorch nn.Linear default init: U(-1/sqrt(fan_in), 1/sqrt(fan_in)).
    # Stored transposed vs. PyTorch's (out, in) so the kernel does x @ W directly.
    k1, k2, k3, k4 = jax.random.split(key, 4)
    bound1 = 1.0 / np.sqrt(NUM_FEATURES)
    bound2 = 1.0 / np.sqrt(HIDDEN)
    w1_t = jax.random.uniform(k1, (NUM_FEATURES, HIDDEN), jnp.float32, -bound1, bound1)
    b1 = jax.random.uniform(k2, (1, HIDDEN), jnp.float32, -bound1, bound1)
    w2_t = jax.random.uniform(k3, (HIDDEN, NUM_CLASSES), jnp.float32, -bound2, bound2)
    b2 = jax.random.uniform(k4, (1, NUM_CLASSES), jnp.float32, -bound2, bound2)
    return w1_t, b1, w2_t, b2


def reference_forward(x, w1_t, b1, w2_t, b2):
    # Reference with the same bf16 input/weight precision, f32 accumulation.
    xb = x.astype(jnp.bfloat16).astype(jnp.float32)
    w1 = w1_t.astype(jnp.bfloat16).astype(jnp.float32)
    w2 = w2_t.astype(jnp.bfloat16).astype(jnp.float32)
    h = jnp.maximum(xb @ w1 + b1, 0.0)
    h = h.astype(jnp.bfloat16).astype(jnp.float32)
    return h @ w2 + b2


if __name__ == "__main__":
    key = jax.random.PRNGKey(0)
    kx, kp = jax.random.split(key)

    B = 8  # small batch for the self-test; the kernel tiles/pipelines arbitrary B
    x = jax.random.normal(kx, (B, NUM_FEATURES), jnp.float32)
    w1_t, b1, w2_t, b2 = init_params(kp)
    w1_p, b1_p, w2_p, b2_p = prepare_params(w1_t, b1, w2_t, b2)

    fwd = jax.jit(mynet_forward)
    out = fwd(x, w1_p, b1_p, w2_p, b2_p)
    out = jax.block_until_ready(out)

    ref = reference_forward(x, w1_t, b1, w2_t, b2)
    np.testing.assert_allclose(np.asarray(out), np.asarray(ref), rtol=1e-2, atol=1e-2)
    assert out.shape == (B, NUM_CLASSES)
    print("KERNEL_OK")
</pallas_src>

<mosaic_0001>
module attributes {stable_mosaic.version = 11 : i64} {
  func.func @mlp_kernel(%arg0: i32, %arg1: memref<8x32xbf16, #tpu.memory_space<vmem>>, %arg2: memref<32x256xbf16, #tpu.memory_space<vmem>>, %arg3: memref<1x256xf32, #tpu.memory_space<vmem>>, %arg4: memref<256x2xbf16, #tpu.memory_space<vmem>>, %arg5: memref<1x2xf32, #tpu.memory_space<vmem>>, %arg6: memref<8x2xf32, #tpu.memory_space<vmem>>) attributes {dimension_semantics = [#tpu.dimension_semantics<parallel>], iteration_bounds = array<i64: 1>, scalar_prefetch = 0 : i64, scratch_operands = 0 : i64, tpu.core_type = #tpu.core_type<tc>, window_params = [{transform_indices = @transform_0, window_bounds = array<i64: 8, 32>}, {pipeline_mode = #tpu.pipeline_mode<synchronous>, transform_indices = @transform_1, window_bounds = array<i64: 32, 256>}, {pipeline_mode = #tpu.pipeline_mode<synchronous>, transform_indices = @transform_2, window_bounds = array<i64: 1, 256>}, {pipeline_mode = #tpu.pipeline_mode<synchronous>, transform_indices = @transform_3, window_bounds = array<i64: 256, 2>}, {pipeline_mode = #tpu.pipeline_mode<synchronous>, transform_indices = @transform_4, window_bounds = array<i64: 1, 2>}, {transform_indices = @transform_5, window_bounds = array<i64: 8, 2>}]} {
    %c0 = arith.constant 0 : index
    %c0_0 = arith.constant 0 : index
    %0 = vector.load %arg1[%c0, %c0_0] : memref<8x32xbf16, #tpu.memory_space<vmem>>, vector<8x32xbf16>
    %c0_1 = arith.constant 0 : index
    %c0_2 = arith.constant 0 : index
    %1 = vector.load %arg2[%c0_1, %c0_2] : memref<32x256xbf16, #tpu.memory_space<vmem>>, vector<32x256xbf16>
    %cst = arith.constant dense<0.000000e+00> : vector<8x256xf32>
    %2 = tpu.matmul %0, %1, %cst {dimension_numbers = #tpu.dot_dimension_numbers<[1], [0], [0], [1], [0, 0, 1, 1], [], []>} : vector<8x32xbf16>, vector<32x256xbf16>, vector<8x256xf32> -> vector<8x256xf32>
    %c0_3 = arith.constant 0 : index
    %c0_4 = arith.constant 0 : index
    %3 = vector.load %arg3[%c0_3, %c0_4] : memref<1x256xf32, #tpu.memory_space<vmem>>, vector<1x256xf32>
    %4 = vector.broadcast %3 : vector<1x256xf32> to vector<8x256xf32>
    %5 = arith.addf %2, %4 : vector<8x256xf32>
    %cst_5 = arith.constant 0.000000e+00 : f32
    %6 = vector.broadcast %cst_5 : f32 to vector<8x256xf32>
    %7 = arith.maximumf %5, %6 : vector<8x256xf32>
    %8 = arith.truncf %7 : vector<8x256xf32> to vector<8x256xbf16>
    %c0_6 = arith.constant 0 : index
    %c0_7 = arith.constant 0 : index
    %9 = vector.load %arg4[%c0_6, %c0_7] : memref<256x2xbf16, #tpu.memory_space<vmem>>, vector<256x2xbf16>
    %cst_8 = arith.constant dense<0.000000e+00> : vector<8x2xf32>
    %10 = tpu.matmul %8, %9, %cst_8 {dimension_numbers = #tpu.dot_dimension_numbers<[1], [0], [0], [1], [0, 0, 1, 1], [], []>} : vector<8x256xbf16>, vector<256x2xbf16>, vector<8x2xf32> -> vector<8x2xf32>
    %c0_9 = arith.constant 0 : index
    %c0_10 = arith.constant 0 : index
    %11 = vector.load %arg5[%c0_9, %c0_10] : memref<1x2xf32, #tpu.memory_space<vmem>>, vector<1x2xf32>
    %12 = vector.broadcast %11 : vector<1x2xf32> to vector<8x2xf32>
    %13 = arith.addf %10, %12 : vector<8x2xf32>
    %c0_11 = arith.constant 0 : index
    %c0_12 = arith.constant 0 : index
    %14 = vector.load %arg6[%c0_11, %c0_12] : memref<8x2xf32, #tpu.memory_space<vmem>>, vector<8x2xf32>
    tpu.vector_store %arg6[%c0_11, %c0_12], %13 {strides = array<i32>} : memref<8x2xf32, #tpu.memory_space<vmem>>, vector<8x2xf32>,
    return
  }
  func.func @transform_0(%arg0: i32) -> (i32, i32) {
    %c0_i32 = arith.constant 0 : i32
    %c0_i32_0 = arith.constant 0 : i32
    return %arg0, %c0_i32 : i32, i32
  }
  func.func @transform_1(%arg0: i32) -> (i32, i32) {
    %c0_i32 = arith.constant 0 : i32
    %c0_i32_0 = arith.constant 0 : i32
    %c0_i32_1 = arith.constant 0 : i32
    return %c0_i32, %c0_i32_0 : i32, i32
  }
  func.func @transform_2(%arg0: i32) -> (i32, i32) {
    %c0_i32 = arith.constant 0 : i32
    %c0_i32_0 = arith.constant 0 : i32
    %c0_i32_1 = arith.constant 0 : i32
    return %c0_i32, %c0_i32_0 : i32, i32
  }
  func.func @transform_3(%arg0: i32) -> (i32, i32) {
    %c0_i32 = arith.constant 0 : i32
    %c0_i32_0 = arith.constant 0 : i32
    %c0_i32_1 = arith.constant 0 : i32
    return %c0_i32, %c0_i32_0 : i32, i32
  }
  func.func @transform_4(%arg0: i32) -> (i32, i32) {
    %c0_i32 = arith.constant 0 : i32
    %c0_i32_0 = arith.constant 0 : i32
    %c0_i32_1 = arith.constant 0 : i32
    return %c0_i32, %c0_i32_0 : i32, i32
  }
  func.func @transform_5(%arg0: i32) -> (i32, i32) {
    %c0_i32 = arith.constant 0 : i32
    %c0_i32_0 = arith.constant 0 : i32
    return %arg0, %c0_i32 : i32, i32
  }
}

</mosaic_0001>

<llo_original>
// kernel: mynet_forward.1
$region0: #{mynet_forward.1}
  #allocation0 [shape = 'u32[]', space=smem, size = 0x4, offset = 0x4, fixed_abs, tag = 'smem constant byte address 0x4 - core index']
  #allocation1 [shape = 'u32[144,128]{1,0:T(1,128)}', space=vmem, size = 0x12000, scoped, tag = 'internal scratch']
  %s0 = inlined_call_operand.vmem [shape: bf16[8,32], index: 0, kind: input, shape index: {}]
  %s1 = inlined_call_operand.vmem [shape: bf16[32,256], index: 1, kind: input, shape index: {}]
  %s2 = inlined_call_operand.vmem [shape: f32[1,256], index: 2, kind: input, shape index: {}]
  %s3 = inlined_call_operand.vmem [shape: bf16[256,2], index: 3, kind: input, shape index: {}]
  %s4 = inlined_call_operand.vmem [shape: f32[1,2], index: 4, kind: input, shape index: {}]
  %s5 = inlined_call_operand.vmem [shape: f32[8,2], index: 5, kind: output, shape index: {}]
  %s6 = sld [smem:[#allocation0]]
  $region30: #{mynet_forward.1} parent=0
    _
  %s8 = ssub.s32 1, %s6
  %s9 = scalar_select 0, %s8, %s6
  // Predicated region
  $region2: #{mynet_forward.1} parent=0 // pred_check
    _
  $region3: #{mynet_forward.1} parent=0 // pred_check_branch
    %11 = sbr.rel (0) target = $region5
  $region4: #{mynet_forward.1} parent=0 // pred_region
    _
  $region5: #{mynet_forward.1} parent=0 // pred_fallthru
    _
  // Predicated region
  $region6: #{mynet_forward.1} parent=0 // pred_check
    _
  $region7: #{mynet_forward.1} parent=0 // pred_check_branch
    %13 = sbr.rel (0) target = $region9
  $region8: #{mynet_forward.1} parent=0 // pred_region
    _
  $region9: #{mynet_forward.1} parent=0 // pred_fallthru
    _
  // Predicated region
  $region10: #{mynet_forward.1} parent=0 // pred_check
    _
  $region11: #{mynet_forward.1} parent=0 // pred_check_branch
    %15 = sbr.rel (0) target = $region13
  $region12: #{mynet_forward.1} parent=0 // pred_region
    _
  $region13: #{mynet_forward.1} parent=0 // pred_fallthru
    _
  // Predicated region
  $region14: #{mynet_forward.1} parent=0 // pred_check
    _
  $region15: #{mynet_forward.1} parent=0 // pred_check_branch
    %17 = sbr.rel (0) target = $region17
  $region16: #{mynet_forward.1} parent=0 // pred_region
    _
  $region17: #{mynet_forward.1} parent=0 // pred_fallthru
    _
  // Predicated region
  $region18: #{mynet_forward.1} parent=0 // pred_check
    _
  $region19: #{mynet_forward.1} parent=0 // pred_check_branch
    %19 = sbr.rel (0) target = $region21
  $region20: #{mynet_forward.1} parent=0 // pred_region
    _
  $region21: #{mynet_forward.1} parent=0 // pred_fallthru
    _
  %v21 = vld [vmem:[%s0] sm:$0xf]
  %v22 = vld [vmem:[%s1] sm:$0xff]
  %v23 = vld [vmem:[%s1 + $0x8] sm:$0xff]
  %v24 = vld [vmem:[%s1 + $0x10] sm:$0xff]
  %v25 = vld [vmem:[%s1 + $0x18] sm:$0xff]
  %v26 = vld [vmem:[%s2] sm:$0x3]
  %v28 = vlaneseq
  %v29 = vshrl.u32 %v28, 7
  %v30 = vsub.s32 0, %v29
  %v31 = vrot.slane %v26, %v30
  %v32 = vlaneseq
  %v33 = vshrl.u32 %v32, 7
  %v34 = vsub.s32 1, %v33
  %v35 = vrot.slane %v26, %v34
  %v42 = vunpack.c.l.b16 %v22
  %v43 = vunpack.c.h.b16 %v22
  %v44 = vunpack.c.l.b16 %v23
  %v45 = vunpack.c.h.b16 %v23
  %v46 = vunpack.c.l.b16 %v24
  %v47 = vunpack.c.h.b16 %v24
  %v48 = vunpack.c.l.b16 %v25
  %v49 = vunpack.c.h.b16 %v25
  %v50 = vpack.c.b16 %v44, %v42
  %v51 = vpack.c.b16 %v45, %v43
  %v52 = vpack.c.b16 %v48, %v46
  %v53 = vpack.c.b16 %v49, %v47
  %vm58 = vcmask 261120
  %v60 = vsel %vm58, %v21, 0
  %62 = vmatprep.subr.bf16.mxu0 %v51
  %63 = vmatpush1.bf16.msra.mxu0 %v50
  %64 = vmatprep.subr.bf16.mxu0 %v53
  %65 = vmatpush1.bf16.msra.mxu0 %v52
  %66 = vmatprep.subr.bf16.mxu0 0
  %67 = vmatpush1.bf16.msra.mxu0 0
  %68 = vmatprep.subr.bf16.mxu0 0
  %69 = vmatpush1.bf16.msra.mxu0 0
  %70 = vmatprep.subr.bf16.mxu0 0
  %71 = vmatpush1.bf16.msra.mxu0 0
  %72 = vmatprep.subr.bf16.mxu0 0
  %73 = vmatpush1.bf16.msra.mxu0 0
  %74 = vmatprep.subr.bf16.mxu0 0
  %75 = vmatpush1.bf16.msra.mxu0 0
  %76 = vmatprep.subr.bf16.mxu0 0
  %77 = vmatpush1.bf16.msra.mxu0 0
  %78 = vmatprep.subr.bf16.mxu0 0
  %79 = vmatpush1.bf16.msra.mxu0 0
  %80 = vmatprep.subr.bf16.mxu0 0
  %81 = vmatpush1.bf16.msra.mxu0 0
  %82 = vmatprep.subr.bf16.mxu0 0
  %83 = vmatpush1.bf16.msra.mxu0 0
  %84 = vmatprep.subr.bf16.mxu0 0
  %85 = vmatpush1.bf16.msra.mxu0 0
  %86 = vmatprep.subr.bf16.mxu0 0
  %87 = vmatpush1.bf16.msra.mxu0 0
  %88 = vmatprep.subr.bf16.mxu0 0
  %89 = vmatpush1.bf16.msra.mxu0 0
  %90 = vmatprep.subr.bf16.mxu0 0
  %91 = vmatpush1.bf16.msra.mxu0 0
  %92 = vmatprep.subr.bf16.mxu0 0
  %93 = vmatpush1.bf16.msra.mxu0 0
  %94 = vmatprep.mubr.bf16.mxu0 0
  %95 = vmatmul.mubr.bf16.gmra.mrb[0].mxu0 %v60
  %v96 = vpop.f32.mrb[0].mxu0
  %v97 = vadd.f32 %v31, %v96
  %v98 = vpop.f32.mrb[0].mxu0
  %v99 = vadd.f32 %v35, %v98
  %v100 = vpop.f32.mrb[0].mxu0
  %v101 = vpop.f32.mrb[0].mxu0
  %102 = vdwg.mxu0
  %v103 = vmax.f32 %v97, 0.0
  %v104 = vmax.f32 %v99, 0.0
  %v105 = vpack.c.bf16 %v103, %v103
  %v106 = vpack.c.bf16 %v104, %v104
  %v107 = vld [vmem:[%s3] sm:$0xf]
  %v108 = vld [vmem:[%s3 + $0x4] sm:$0xf]
  %v109 = vld [vmem:[%s3 + $0x8] sm:$0xf]
  %v110 = vld [vmem:[%s3 + $0xc] sm:$0xf]
  %v111 = vld [vmem:[%s3 + $0x10] sm:$0xf]
  %v112 = vld [vmem:[%s3 + $0x14] sm:$0xf]
  %v113 = vld [vmem:[%s3 + $0x18] sm:$0xf]
  %v114 = vld [vmem:[%s3 + $0x1c] sm:$0xf]
  %v115 = vld [vmem:[%s3 + $0x20] sm:$0xf]
  %v116 = vld [vmem:[%s3 + $0x24] sm:$0xf]
  %v117 = vld [vmem:[%s3 + $0x28] sm:$0xf]
  %v118 = vld [vmem:[%s3 + $0x2c] sm:$0xf]
  %v119 = vld [vmem:[%s3 + $0x30] sm:$0xf]
  %v120 = vld [vmem:[%s3 + $0x34] sm:$0xf]
  %v121 = vld [vmem:[%s3 + $0x38] sm:$0xf]
  %v122 = vld [vmem:[%s3 + $0x3c] sm:$0xf]
  %v123 = vld [vmem:[%s3 + $0x40] sm:$0xf]
  %v124 = vld [vmem:[%s3 + $0x44] sm:$0xf]
  %v125 = vld [vmem:[%s3 + $0x48] sm:$0xf]
  %v126 = vld [vmem:[%s3 + $0x4c] sm:$0xf]
  %v127 = vld [vmem:[%s3 + $0x50] sm:$0xf]
  %v128 = vld [vmem:[%s3 + $0x54] sm:$0xf]
  %v129 = vld [vmem:[%s3 + $0x58] sm:$0xf]
  %v130 = vld [vmem:[%s3 + $0x5c] sm:$0xf]
  %v131 = vld [vmem:[%s3 + $0x60] sm:$0xf]
  %v132 = vld [vmem:[%s3 + $0x64] sm:$0xf]
  %v133 = vld [vmem:[%s3 + $0x68] sm:$0xf]
  %v134 = vld [vmem:[%s3 + $0x6c] sm:$0xf]
  %v135 = vld [vmem:[%s3 + $0x70] sm:$0xf]
  %v136 = vld [vmem:[%s3 + $0x74] sm:$0xf]
  %v137 = vld [vmem:[%s3 + $0x78] sm:$0xf]
  %v138 = vld [vmem:[%s3 + $0x7c] sm:$0xf]
  %v139 = vld [vmem:[%s4] sm:$0x1]
  %v141 = vlaneseq
  %v142 = vshrl.u32 %v141, 7
  %v143 = vsub.s32 0, %v142
  %v144 = vrot.slane %v139, %v143
  %v178 = vunpack.c.l.b16 %v107
  %v179 = vunpack.c.l.b16 %v108
  %v180 = vunpack.c.l.b16 %v109
  %v181 = vunpack.c.l.b16 %v110
  %v182 = vunpack.c.l.b16 %v111
  %v183 = vunpack.c.l.b16 %v112
  %v184 = vunpack.c.l.b16 %v113
  %v185 = vunpack.c.l.b16 %v114
  %v186 = vunpack.c.l.b16 %v115
  %v187 = vunpack.c.l.b16 %v116
  %v188 = vunpack.c.l.b16 %v117
  %v189 = vunpack.c.l.b16 %v118
  %v190 = vunpack.c.l.b16 %v119
  %v191 = vunpack.c.l.b16 %v120
  %v192 = vunpack.c.l.b16 %v121
  %v193 = vunpack.c.l.b16 %v122
  %v194 = vunpack.c.l.b16 %v123
  %v195 = vunpack.c.l.b16 %v124
  %v196 = vunpack.c.l.b16 %v125
  %v197 = vunpack.c.l.b16 %v126
  %v198 = vunpack.c.l.b16 %v127
  %v199 = vunpack.c.l.b16 %v128
  %v200 = vunpack.c.l.b16 %v129
  %v201 = vunpack.c.l.b16 %v130
  %v202 = vunpack.c.l.b16 %v131
  %v203 = vunpack.c.l.b16 %v132
  %v204 = vunpack.c.l.b16 %v133
  %v205 = vunpack.c.l.b16 %v134
  %v206 = vunpack.c.l.b16 %v135
  %v207 = vunpack.c.l.b16 %v136
  %v208 = vunpack.c.l.b16 %v137
  %v209 = vunpack.c.l.b16 %v138
  %v210 = vpack.c.b16 %v179, %v178
  %v211 = vpack.c.b16 %v181, %v180
  %v212 = vpack.c.b16 %v183, %v182
  %v213 = vpack.c.b16 %v185, %v184
  %v214 = vpack.c.b16 %v187, %v186
  %v215 = vpack.c.b16 %v189, %v188
  %v216 = vpack.c.b16 %v191, %v190
  %v217 = vpack.c.b16 %v193, %v192
  %v218 = vpack.c.b16 %v195, %v194
  %v219 = vpack.c.b16 %v197, %v196
  %v220 = vpack.c.b16 %v199, %v198
  %v221 = vpack.c.b16 %v201, %v200
  %v222 = vpack.c.b16 %v203, %v202
  %v223 = vpack.c.b16 %v205, %v204
  %v224 = vpack.c.b16 %v207, %v206
  %v225 = vpack.c.b16 %v209, %v208
  %242 = vmatprep.subr.bf16.mxu0 0
  %243 = vmatpush1.bf16.msra.mxu0 %v210
  %244 = vmatprep.subr.bf16.mxu0 0
  %245 = vmatpush1.bf16.msra.mxu0 %v211
  %246 = vmatprep.subr.bf16.mxu0 0
  %247 = vmatpush1.bf16.msra.mxu0 %v212
  %248 = vmatprep.subr.bf16.mxu0 0
  %249 = vmatpush1.bf16.msra.mxu0 %v213
  %250 = vmatprep.subr.bf16.mxu0 0
  %251 = vmatpush1.bf16.msra.mxu0 %v214
  %252 = vmatprep.subr.bf16.mxu0 0
  %253 = vmatpush1.bf16.msra.mxu0 %v215
  %254 = vmatprep.subr.bf16.mxu0 0
  %255 = vmatpush1.bf16.msra.mxu0 %v216
  %256 = vmatprep.subr.bf16.mxu0 0
  %257 = vmatpush1.bf16.msra.mxu0 %v217
  %258 = vmatprep.subr.bf16.mxu0 0
  %259 = vmatpush1.bf16.msra.mxu0 %v218
  %260 = vmatprep.subr.bf16.mxu0 0
  %261 = vmatpush1.bf16.msra.mxu0 %v219
  %262 = vmatprep.subr.bf16.mxu0 0
  %263 = vmatpush1.bf16.msra.mxu0 %v220
  %264 = vmatprep.subr.bf16.mxu0 0
  %265 = vmatpush1.bf16.msra.mxu0 %v221
  %266 = vmatprep.subr.bf16.mxu0 0
  %267 = vmatpush1.bf16.msra.mxu0 %v222
  %268 = vmatprep.subr.bf16.mxu0 0
  %269 = vmatpush1.bf16.msra.mxu0 %v223
  %270 = vmatprep.subr.bf16.mxu0 0
  %271 = vmatpush1.bf16.msra.mxu0 %v224
  %272 = vmatprep.subr.bf16.mxu0 0
  %273 = vmatpush1.bf16.msra.mxu0 %v225
  %274 = vmatprep.mubr.bf16.mxu0 %v106
  %275 = vmatmul.mubr.bf16.gmra.mrb[0].mxu0 %v105
  %v276 = vpop.f32.mrb[0].mxu0
  %v277 = vadd.f32 %v144, %v276
  %v278 = vpop.f32.mrb[0].mxu0
  %v279 = vpop.f32.mrb[0].mxu0
  %v280 = vpop.f32.mrb[0].mxu0
  %281 = vdwg.mxu0
  %vm282 = vcmask 15360
  %283 = vst.msk [vmem:[%s5] sm:$0xff] %vm282, %v277
  // Predicated region
  $region22: #{mynet_forward.1} parent=0 // pred_check
    _
  $region23: #{mynet_forward.1} parent=0 // pred_check_branch
    %285 = sbr.rel (0) target = $region25
  $region24: #{mynet_forward.1} parent=0 // pred_region
    _
  $region25: #{mynet_forward.1} parent=0 // pred_fallthru
    _
  // Predicated region
  $region26: #{mynet_forward.1} parent=0 // pred_check
    _
  $region27: #{mynet_forward.1} parent=0 // pred_check_branch
    %287 = sbr.rel (0) target = $region29
  $region28: #{mynet_forward.1} parent=0 // pred_region
    _
  $region29: #{mynet_forward.1} parent=0 // pred_fallthru
    _

</llo_original>
